<compile_context>
chip_gen: v6e
topology: v6e:2x2x1
jax: 0.10.0
libtpu: 0.0.40
codegen_flags: <defaults>
</compile_context>

<pallas_src>
import functools
import numpy as np
import jax
import jax.numpy as jnp
from jax import lax
from jax.experimental import pallas as pl
from jax.experimental.pallas import tpu as pltpu

VMEM_LIMIT = 32 * 1024 * 1024


# ---------------------------------------------------------------------------
# Kernel 1: fused block-diagonal 5-stream encoder + delta / double-delta
# ---------------------------------------------------------------------------

def _enc_delta_kernel(*refs, n_layers):
    # refs = (x, D, [w, b, relu_mask] * n_layers, out)
    x_ref = refs[0]
    d_ref = refs[1]
    o_ref = refs[2 + 3 * n_layers]

    h = x_ref[0]                                            # (T, F_in) f32
    for l in range(n_layers):
        w_ref = refs[2 + 3 * l]
        b_ref = refs[3 + 3 * l]
        m_ref = refs[4 + 3 * l]
        h = jnp.dot(h.astype(jnp.bfloat16), w_ref[...],
                    preferred_element_type=jnp.float32) + b_ref[...]
        h = jnp.where(m_ref[...] > 0.0, jnp.maximum(h, 0.0), h)

    # delta / double-delta via the (T, T) stencil operator (exact PyTorch
    # edge-replication semantics, per-tap weight 1/(2j), no normalisation).
    # TODO(synk): for very long T on v7x, replace the dense (T, T) operator
    # with a roll-based stencil to save VMEM.
    D = d_ref[...]
    d1 = jnp.dot(D, h, preferred_element_type=jnp.float32)
    d2 = jnp.dot(D, d1, preferred_element_type=jnp.float32)
    # single lane-dense store: [enc_all | delta_all | ddelta_all]
    o_ref[0] = jnp.concatenate([h, d1, d2], axis=-1)


def encoder_delta(x_cat, delta_mat, enc_layers, enc_out_total):
    B, T, Fin = x_cat.shape
    n_layers = len(enc_layers)
    args = [x_cat, delta_mat]
    in_specs = [pl.BlockSpec((1, T, Fin), lambda b: (b, 0, 0)),
                pl.BlockSpec((T, T), lambda b: (0, 0))]
    for (w, bvec, m) in enc_layers:
        args += [w, bvec, m]
        in_specs += [pl.BlockSpec(w.shape, lambda b: (0, 0)),
                     pl.BlockSpec(bvec.shape, lambda b: (0, 0)),
                     pl.BlockSpec(m.shape, lambda b: (0, 0))]
    return pl.pallas_call(
        functools.partial(_enc_delta_kernel, n_layers=n_layers),
        out_shape=jax.ShapeDtypeStruct((B, T, 3 * enc_out_total), jnp.float32),
        grid=(B,),
        in_specs=in_specs,
        out_specs=pl.BlockSpec((1, T, 3 * enc_out_total), lambda b: (b, 0, 0)),
        compiler_params=pltpu.CompilerParams(
            dimension_semantics=("parallel",),
            vmem_limit_bytes=VMEM_LIMIT),
    )(*args)


# ---------------------------------------------------------------------------
# Kernel 2: bidirectional LSTM recurrence, grid over streams
#   - input projection hoisted out of the time loop (one bf16 MXU matmul)
#   - lax.fori_loop recurrence, time-major scratch, masked packed-seq semantics
#   - one lane-dense output store per grid step
# ---------------------------------------------------------------------------

def _bilstm_kernel(xin_ref, w_ref, b_ref, whhf_ref, whhb_ref,
                   h0f_ref, c0f_ref, h0b_ref, c0b_ref, mask_ref,
                   o_ref, g_scr, outf_scr, outb_scr, *, hidden):
    T = mask_ref.shape[0]
    B = mask_ref.shape[1]
    H = hidden

    # Hoisted input projection: all timesteps, both directions, one matmul.
    g_scr[...] = (jnp.dot(xin_ref[...].astype(jnp.bfloat16), w_ref[...],
                          preferred_element_type=jnp.float32) + b_ref[...])

    whh_f = whhf_ref[0]                                     # (H, 4H) f32
    whh_b = whhb_ref[0]

    def lstm_step(pre, h, c, whh):
        z = pre + jnp.dot(h, whh, preferred_element_type=jnp.float32)
        i = jax.nn.sigmoid(z[:, 0:H])
        f = jax.nn.sigmoid(z[:, H:2 * H])
        g = jnp.tanh(z[:, 2 * H:3 * H])
        o = jax.nn.sigmoid(z[:, 3 * H:4 * H])
        c_new = f * c + i * g
        h_new = o * jnp.tanh(c_new)
        return h_new, c_new

    def fwd_body(t, carry):
        h, c = carry
        gt = g_scr[pl.ds(t * B, B), :]                      # (B, 8H)
        h_new, c_new = lstm_step(gt[:, 0:4 * H], h, c, whh_f)
        m = mask_ref[t]                                     # (B, 1)
        outf_scr[t] = m * h_new
        return (m * h_new + (1.0 - m) * h, m * c_new + (1.0 - m) * c)

    lax.fori_loop(0, T, fwd_body, (h0f_ref[0], c0f_ref[0]))

    def bwd_body(k, carry):
        t = T - 1 - k
        h, c = carry
        gt = g_scr[pl.ds(t * B, B), :]
        h_new, c_new = lstm_step(gt[:, 4 * H:8 * H], h, c, whh_b)
        m = mask_ref[t]
        outb_scr[t] = m * h_new
        return (m * h_new + (1.0 - m) * h, m * c_new + (1.0 - m) * c)

    lax.fori_loop(0, T, bwd_body, (h0b_ref[0], c0b_ref[0]))

    # single lane-dense store of the whole (T, B, 2H) tile
    o_ref[0] = jnp.concatenate([outf_scr[...], outb_scr[...]], axis=-1)


def bilstm_multi(xin2d, mask, w_ih, b_ih, whh_f, whh_b,
                 h0f, c0f, h0b, c0b, hidden):
    # TODO(synk): for large B*T add a batch-tile grid axis so blocks still fit
    # v7x's 64 MiB VMEM; at these shapes whole-sequence residency is tiny.
    S = whh_f.shape[0]
    T, B = mask.shape[0], mask.shape[1]
    Din = xin2d.shape[1]
    H = hidden
    return pl.pallas_call(
        functools.partial(_bilstm_kernel, hidden=H),
        out_shape=jax.ShapeDtypeStruct((S, T, B, 2 * H), jnp.float32),
        grid=(S,),
        in_specs=[
            pl.BlockSpec((T * B, Din), lambda s: (0, 0)),
            pl.BlockSpec((Din, 8 * H), lambda s: (0, s)),
            pl.BlockSpec((1, 8 * H), lambda s: (0, s)),
            pl.BlockSpec((1, H, 4 * H), lambda s: (s, 0, 0)),
            pl.BlockSpec((1, H, 4 * H), lambda s: (s, 0, 0)),
            pl.BlockSpec((1, B, H), lambda s: (s, 0, 0)),
            pl.BlockSpec((1, B, H), lambda s: (s, 0, 0)),
            pl.BlockSpec((1, B, H), lambda s: (s, 0, 0)),
            pl.BlockSpec((1, B, H), lambda s: (s, 0, 0)),
            pl.BlockSpec((T, B, 1), lambda s: (0, 0, 0)),
        ],
        out_specs=pl.BlockSpec((1, T, B, 2 * H), lambda s: (s, 0, 0, 0)),
        scratch_shapes=[pltpu.VMEM((T * B, 8 * H), jnp.float32),
                        pltpu.VMEM((T, B, H), jnp.float32),
                        pltpu.VMEM((T, B, H), jnp.float32)],
        compiler_params=pltpu.CompilerParams(
            dimension_semantics=("parallel",),
            vmem_limit_bytes=VMEM_LIMIT),
    )(xin2d, w_ih, b_ih, whh_f, whh_b, h0f, c0f, h0b, c0b, mask)


# ---------------------------------------------------------------------------
# Kernel 3: output Linear + Softmax
# ---------------------------------------------------------------------------

def _out_softmax_kernel(x_ref, w_ref, b_ref, o_ref):
    x = x_ref[0]                                            # (T, 2H)
    y = jnp.dot(x.astype(jnp.bfloat16), w_ref[...],
                preferred_element_type=jnp.float32) + b_ref[...]
    y = y - jnp.max(y, axis=-1, keepdims=True)
    e = jnp.exp(y)
    o_ref[0] = e * pl.reciprocal(jnp.sum(e, axis=-1, keepdims=True), approx=True)


def out_softmax(x, w, b):
    B, T, F = x.shape
    C = w.shape[1]
    return pl.pallas_call(
        _out_softmax_kernel,
        out_shape=jax.ShapeDtypeStruct((B, T, C), jnp.float32),
        grid=(B,),
        in_specs=[pl.BlockSpec((1, T, F), lambda b: (b, 0, 0)),
                  pl.BlockSpec((F, C), lambda b: (0, 0)),
                  pl.BlockSpec((1, C), lambda b: (0, 0))],
        out_specs=pl.BlockSpec((1, T, C), lambda b: (b, 0, 0)),
        compiler_params=pltpu.CompilerParams(
            dimension_semantics=("parallel",),
            vmem_limit_bytes=VMEM_LIMIT),
    )(x, w, b)


# ---------------------------------------------------------------------------
# Parameter construction (deterministic, synthetic) and fusion packing
# ---------------------------------------------------------------------------

def _init_linear(key, fan_in, fan_out):
    k1, k2 = jax.random.split(key)
    bound = 1.0 / np.sqrt(fan_in)
    w = jax.random.uniform(k1, (fan_in, fan_out), jnp.float32, -bound, bound)
    b = jax.random.uniform(k2, (fan_out,), jnp.float32, -bound, bound)
    return np.asarray(w), np.asarray(b)


def _init_lstm_dir(key, input_size, H):
    ks = jax.random.split(key, 4)
    bound = 1.0 / np.sqrt(H)
    wih = jax.random.uniform(ks[0], (input_size, 4 * H), jnp.float32, -bound, bound)
    whh = jax.random.uniform(ks[1], (H, 4 * H), jnp.float32, -bound, bound)
    b_ih = jax.random.uniform(ks[2], (4 * H,), jnp.float32, -bound, bound)
    b_hh = jax.random.uniform(ks[3], (4 * H,), jnp.float32, -bound, bound)
    return np.asarray(wih), np.asarray(whh), np.asarray(b_ih + b_hh)


def _init_bilstm(key, input_size, H):
    kf, kb = jax.random.split(key)
    wif, whf, bf = _init_lstm_dir(kf, input_size, H)
    wib, whb, bb = _init_lstm_dir(kb, input_size, H)
    return dict(wif=wif, whf=whf, bf=bf, wib=wib, whb=whb, bb=bb)


def make_delta_matrix(T, window):
    D = np.zeros((T, T), dtype=np.float32)
    for i in range(T):
        for j in range(1, window + 1):
            D[i, min(i + j, T - 1)] += 1.0 / (2 * j)
            D[i, max(i - j, 0)] -= 1.0 / (2 * j)
    return jnp.asarray(D)


def init_adenet_params(key, input_sizes, shapes_list, nonlins_list, window,
                       hidden_units, output_classes):
    S = len(input_sizes)
    n_layers = len(shapes_list[0])
    assert all(len(sh) == n_layers for sh in shapes_list), \
        "fused encoder assumes the same number of layers per stream"
    H = hidden_units
    keys = jax.random.split(key, 2 * S + 2)

    per_enc, per_lstm = [], []
    for s in range(S):
        lkeys = jax.random.split(keys[2 * s], n_layers)
        prev = input_sizes[s]
        layers = []
        for l in range(n_layers):
            w, b = _init_linear(lkeys[l], prev, shapes_list[s][l])
            layers.append((w, b, nonlins_list[s][l]))
            prev = shapes_list[s][l]
        per_enc.append(layers)
        per_lstm.append(_init_bilstm(keys[2 * s + 1], shapes_list[s][-1] * 3, H))

    # block-diagonal fused encoder layers (5 streams -> one matmul per layer)
    enc_layers = []
    prev_dims = list(input_sizes)
    for l in range(n_layers):
        out_dims = [shapes_list[s][l] for s in range(S)]
        Win, Wout = sum(prev_dims), sum(out_dims)
        Wbig = np.zeros((Win, Wout), np.float32)
        bbig = np.zeros((Wout,), np.float32)
        mbig = np.zeros((Wout,), np.float32)
        ro = co = 0
        for s in range(S):
            w, b, act = per_enc[s][l]
            Wbig[ro:ro + prev_dims[s], co:co + out_dims[s]] = w
            bbig[co:co + out_dims[s]] = b
            mbig[co:co + out_dims[s]] = 1.0 if act == 'rectify' else 0.0
            ro += prev_dims[s]
            co += out_dims[s]
        enc_layers.append((jnp.asarray(Wbig, jnp.bfloat16),
                           jnp.asarray(bbig.reshape(1, -1), jnp.float32),
                           jnp.asarray(mbig.reshape(1, -1), jnp.float32)))
        prev_dims = out_dims

    E = [shapes_list[s][-1] for s in range(S)]
    Etot = sum(E)
    e_off = np.concatenate([[0], np.cumsum(E)]).astype(np.int64)

    # Fused LSTM input-projection weight: rows follow the fused delta-layer
    # output ordering [enc_all | delta_all | ddelta_all]; columns per
    # (stream, direction) pack the 4H gates [i|f|g|o].
    Wih = np.zeros((3 * Etot, S * 8 * H), np.float32)
    bih = np.zeros((S * 8 * H,), np.float32)
    whh_f = np.zeros((S, H, 4 * H), np.float32)
    whh_b = np.zeros((S, H, 4 * H), np.float32)
    for s in range(S):
        p = per_lstm[s]
        for d, (wih_s, whh_s, b_s) in enumerate(
                [(p['wif'], p['whf'], p['bf']), (p['wib'], p['whb'], p['bb'])]):
            col = s * 8 * H + d * 4 * H
            for k in range(3):
                rows = slice(k * Etot + e_off[s], k * Etot + e_off[s] + E[s])
                Wih[rows, col:col + 4 * H] = wih_s[k * E[s]:(k + 1) * E[s], :]
            bih[col:col + 4 * H] = b_s
            if d == 0:
                whh_f[s] = whh_s
            else:
                whh_b[s] = whh_s

    agg = _init_bilstm(keys[2 * S], 2 * H * S, H)
    w_ih_agg = np.concatenate([agg['wif'], agg['wib']], axis=1)        # (2HS, 8H)
    b_ih_agg = np.concatenate([agg['bf'], agg['bb']]).reshape(1, -1)   # (1, 8H)

    w_out, b_out = _init_linear(keys[2 * S + 1], 2 * H, output_classes)

    return dict(
        enc_layers=enc_layers,
        enc_out_total=Etot,
        w_ih=jnp.asarray(Wih, jnp.bfloat16),
        b_ih=jnp.asarray(bih.reshape(1, -1), jnp.float32),
        whh_f=jnp.asarray(whh_f), whh_b=jnp.asarray(whh_b),
        w_ih_agg=jnp.asarray(w_ih_agg, jnp.bfloat16),
        b_ih_agg=jnp.asarray(b_ih_agg, jnp.float32),
        whh_agg_f=jnp.asarray(agg['whf'])[None],
        whh_agg_b=jnp.asarray(agg['whb'])[None],
        w_out=jnp.asarray(w_out, jnp.bfloat16),
        b_out=jnp.asarray(b_out.reshape(1, -1), jnp.float32),
        window=window, hidden_units=H, n_streams=S)


# ---------------------------------------------------------------------------
# Forward pass (glue in plain JAX, hot paths in the 4 Pallas kernels)
# ---------------------------------------------------------------------------

def adenet_5stream_forward(params, xs, x_lengths, rng_key):
    B, T, _ = xs[0].shape
    H = params['hidden_units']
    S = params['n_streams']
    Etot = params['enc_out_total']

    # torch.sort(descending=True) on lengths
    ordered_idx = jnp.argsort(-x_lengths)
    lengths_sorted = x_lengths[ordered_idx].astype(jnp.int32)

    # Sort the batch up front (encoder + delta are pointwise over the batch,
    # so this is equivalent to PyTorch's sort after them).
    x_cat = jnp.concatenate(xs, axis=-1)[ordered_idx]           # (B, T, sum Fin)

    delta_mat = make_delta_matrix(T, params['window'])
    enc_out = encoder_delta(x_cat, delta_mat, params['enc_layers'], Etot)

    # time-major, flattened for the hoisted LSTM input projection
    xin2d = jnp.transpose(enc_out, (1, 0, 2)).reshape(T * B, 3 * Etot)

    # packed-sequence validity mask, hoisted out of the recurrence
    mask = (jnp.arange(T, dtype=jnp.int32).reshape(T, 1, 1)
            < lengths_sorted.reshape(1, B, 1)).astype(jnp.float32)   # (T, B, 1)

    # fresh random initial states (PyTorch init_hidden draws randn per forward)
    keys = jax.random.split(rng_key, 2 * S + 2)
    h0 = jnp.stack([jax.random.normal(keys[2 * s], (2, B, H)) for s in range(S)])
    c0 = jnp.stack([jax.random.normal(keys[2 * s + 1], (2, B, H)) for s in range(S)])

    stream_out = bilstm_multi(xin2d, mask,
                              params['w_ih'], params['b_ih'],
                              params['whh_f'], params['whh_b'],
                              h0[:, 0], c0[:, 0], h0[:, 1], c0[:, 1],
                              H)                                 # (S, T, B, 2H)

    # torch.cat((x1..x5), -1): per-stream [fwd|bwd] blocks, stream-major
    agg_in = jnp.transpose(stream_out, (1, 2, 0, 3)).reshape(T * B, S * 2 * H)

    h0a = jax.random.normal(keys[2 * S], (2, B, H))
    c0a = jax.random.normal(keys[2 * S + 1], (2, B, H))
    agg_out = bilstm_multi(agg_in, mask,
                           params['w_ih_agg'], params['b_ih_agg'],
                           params['whh_agg_f'], params['whh_agg_b'],
                           h0a[0:1], c0a[0:1], h0a[1:2], c0a[1:2],
                           H)                                    # (1, T, B, 2H)

    X = jnp.transpose(agg_out[0], (1, 0, 2))                     # (B, T, 2H)
    probs = out_softmax(X, params['w_out'], params['b_out'])
    # NOTE: PyTorch's pad_packed_sequence truncates to max(x_lengths); we keep
    # the full T frames (padded rows carry softmax(bias), matching PyTorch for
    # padded positions within the max length).
    return probs, ordered_idx


# ---------------------------------------------------------------------------
# Demo
# ---------------------------------------------------------------------------

if __name__ == "__main__":
    key = jax.random.PRNGKey(0)
    B, T = 2, 8
    window = 2
    hidden_units = 16
    output_classes = 10
    input_sizes = [12, 10, 8, 6, 14]
    shapes_list = [[24, 16]] * 5
    nonlins_list = [['rectify', 'rectify']] * 5

    kp, kx, kh = jax.random.split(key, 3)
    params = init_adenet_params(kp, input_sizes, shapes_list, nonlins_list,
                                window, hidden_units, output_classes)

    xkeys = jax.random.split(kx, 5)
    xs = [jax.random.normal(xkeys[i], (B, T, input_sizes[i]), jnp.float32)
          for i in range(5)]
    x_lengths = jnp.array([6, 8], dtype=jnp.int32)

    out, ordered_idx = adenet_5stream_forward(params, xs, x_lengths, kh)
    jax.block_until_ready(out)

    assert out.shape == (B, T, output_classes)
    assert ordered_idx.shape == (B,)
    assert bool(jnp.all(jnp.isfinite(out)))
    print("KERNEL_OK")
</pallas_src>

<mosaic_0001>
module attributes {stable_mosaic.version = 11 : i64} {
  func.func @_enc_delta_kernel(%arg0: i32, %arg1: memref<1x8x50xf32, #tpu.memory_space<vmem>>, %arg2: memref<8x8xf32, #tpu.memory_space<vmem>>, %arg3: memref<50x120xbf16, #tpu.memory_space<vmem>>, %arg4: memref<1x120xf32, #tpu.memory_space<vmem>>, %arg5: memref<1x120xf32, #tpu.memory_space<vmem>>, %arg6: memref<120x80xbf16, #tpu.memory_space<vmem>>, %arg7: memref<1x80xf32, #tpu.memory_space<vmem>>, %arg8: memref<1x80xf32, #tpu.memory_space<vmem>>, %arg9: memref<1x8x240xf32, #tpu.memory_space<vmem>>) attributes {dimension_semantics = [#tpu.dimension_semantics<parallel>], iteration_bounds = array<i64: 2>, scalar_prefetch = 0 : i64, scratch_operands = 0 : i64, tpu.core_type = #tpu.core_type<tc>, window_params = [{transform_indices = @transform_0, window_bounds = array<i64: 1, 8, 50>}, {pipeline_mode = #tpu.pipeline_mode<synchronous>, transform_indices = @transform_1, window_bounds = array<i64: 8, 8>}, {pipeline_mode = #tpu.pipeline_mode<synchronous>, transform_indices = @transform_2, window_bounds = array<i64: 50, 120>}, {pipeline_mode = #tpu.pipeline_mode<synchronous>, transform_indices = @transform_3, window_bounds = array<i64: 1, 120>}, {pipeline_mode = #tpu.pipeline_mode<synchronous>, transform_indices = @transform_4, window_bounds = array<i64: 1, 120>}, {pipeline_mode = #tpu.pipeline_mode<synchronous>, transform_indices = @transform_5, window_bounds = array<i64: 120, 80>}, {pipeline_mode = #tpu.pipeline_mode<synchronous>, transform_indices = @transform_6, window_bounds = array<i64: 1, 80>}, {pipeline_mode = #tpu.pipeline_mode<synchronous>, transform_indices = @transform_7, window_bounds = array<i64: 1, 80>}, {transform_indices = @transform_8, window_bounds = array<i64: 1, 8, 240>}]} {
    %c0 = arith.constant 0 : index
    %c0_0 = arith.constant 0 : index
    %c0_1 = arith.constant 0 : index
    %0 = vector.load %arg1[%c0, %c0_0, %c0_1] : memref<1x8x50xf32, #tpu.memory_space<vmem>>, vector<1x8x50xf32>
    %1 = vector.shape_cast %0 : vector<1x8x50xf32> to vector<8x50xf32>
    %2 = arith.truncf %1 : vector<8x50xf32> to vector<8x50xbf16>
    %c0_2 = arith.constant 0 : index
    %c0_3 = arith.constant 0 : index
    %3 = vector.load %arg3[%c0_2, %c0_3] : memref<50x120xbf16, #tpu.memory_space<vmem>>, vector<50x120xbf16>
    %cst = arith.constant dense<0.000000e+00> : vector<8x120xf32>
    %4 = tpu.matmul %2, %3, %cst {dimension_numbers = #tpu.dot_dimension_numbers<[1], [0], [0], [1], [0, 0, 1, 1], [], []>} : vector<8x50xbf16>, vector<50x120xbf16>, vector<8x120xf32> -> vector<8x120xf32>
    %c0_4 = arith.constant 0 : index
    %c0_5 = arith.constant 0 : index
    %5 = vector.load %arg4[%c0_4, %c0_5] : memref<1x120xf32, #tpu.memory_space<vmem>>, vector<1x120xf32>
    %6 = vector.broadcast %5 : vector<1x120xf32> to vector<8x120xf32>
    %7 = arith.addf %4, %6 : vector<8x120xf32>
    %c0_6 = arith.constant 0 : index
    %c0_7 = arith.constant 0 : index
    %8 = vector.load %arg5[%c0_6, %c0_7] : memref<1x120xf32, #tpu.memory_space<vmem>>, vector<1x120xf32>
    %cst_8 = arith.constant 0.000000e+00 : f32
    %9 = vector.broadcast %cst_8 : f32 to vector<1x120xf32>
    %10 = arith.cmpf ogt, %8, %9 : vector<1x120xf32>
    %cst_9 = arith.constant 0.000000e+00 : f32
    %11 = vector.broadcast %cst_9 : f32 to vector<8x120xf32>
    %12 = arith.maximumf %7, %11 : vector<8x120xf32>
    %13 = vector.shape_cast %10 : vector<1x120xi1> to vector<1x120xi1>
    %14 = vector.broadcast %13 : vector<1x120xi1> to vector<8x120xi1>
    %15 = arith.select %14, %12, %7 : vector<8x120xi1>, vector<8x120xf32>
    %16 = arith.truncf %15 : vector<8x120xf32> to vector<8x120xbf16>
    %c0_10 = arith.constant 0 : index
    %c0_11 = arith.constant 0 : index
    %17 = vector.load %arg6[%c0_10, %c0_11] : memref<120x80xbf16, #tpu.memory_space<vmem>>, vector<120x80xbf16>
    %cst_12 = arith.constant dense<0.000000e+00> : vector<8x80xf32>
    %18 = tpu.matmul %16, %17, %cst_12 {dimension_numbers = #tpu.dot_dimension_numbers<[1], [0], [0], [1], [0, 0, 1, 1], [], []>} : vector<8x120xbf16>, vector<120x80xbf16>, vector<8x80xf32> -> vector<8x80xf32>
    %c0_13 = arith.constant 0 : index
    %c0_14 = arith.constant 0 : index
    %19 = vector.load %arg7[%c0_13, %c0_14] : memref<1x80xf32, #tpu.memory_space<vmem>>, vector<1x80xf32>
    %20 = vector.broadcast %19 : vector<1x80xf32> to vector<8x80xf32>
    %21 = arith.addf %18, %20 : vector<8x80xf32>
    %c0_15 = arith.constant 0 : index
    %c0_16 = arith.constant 0 : index
    %22 = vector.load %arg8[%c0_15, %c0_16] : memref<1x80xf32, #tpu.memory_space<vmem>>, vector<1x80xf32>
    %cst_17 = arith.constant 0.000000e+00 : f32
    %23 = vector.broadcast %cst_17 : f32 to vector<1x80xf32>
    %24 = arith.cmpf ogt, %22, %23 : vector<1x80xf32>
    %cst_18 = arith.constant 0.000000e+00 : f32
    %25 = vector.broadcast %cst_18 : f32 to vector<8x80xf32>
    %26 = arith.maximumf %21, %25 : vector<8x80xf32>
    %27 = vector.shape_cast %24 : vector<1x80xi1> to vector<1x80xi1>
    %28 = vector.broadcast %27 : vector<1x80xi1> to vector<8x80xi1>
    %29 = arith.select %28, %26, %21 : vector<8x80xi1>, vector<8x80xf32>
    %c0_19 = arith.constant 0 : index
    %c0_20 = arith.constant 0 : index
    %30 = vector.load %arg2[%c0_19, %c0_20] : memref<8x8xf32, #tpu.memory_space<vmem>>, vector<8x8xf32>
    %cst_21 = arith.constant dense<0.000000e+00> : vector<8x80xf32>
    %31 = tpu.matmul %30, %29, %cst_21 {dimension_numbers = #tpu.dot_dimension_numbers<[1], [0], [0], [1], [0, 0, 1, 1], [], []>} : vector<8x8xf32>, vector<8x80xf32>, vector<8x80xf32> -> vector<8x80xf32>
    %cst_22 = arith.constant dense<0.000000e+00> : vector<8x80xf32>
    %32 = tpu.matmul %30, %31, %cst_22 {dimension_numbers = #tpu.dot_dimension_numbers<[1], [0], [0], [1], [0, 0, 1, 1], [], []>} : vector<8x8xf32>, vector<8x80xf32>, vector<8x80xf32> -> vector<8x80xf32>
    %33 = tpu.concatenate %29, %31, %32 in 1 : vector<8x80xf32>, vector<8x80xf32>, vector<8x80xf32> -> vector<8x240xf32>
    %c0_23 = arith.constant 0 : index
    %c0_24 = arith.constant 0 : index
    %c0_25 = arith.constant 0 : index
    %34 = vector.load %arg9[%c0_23, %c0_24, %c0_25] : memref<1x8x240xf32, #tpu.memory_space<vmem>>, vector<1x8x240xf32>
    %35 = vector.shape_cast %34 : vector<1x8x240xf32> to vector<8x240xf32>
    %36 = vector.shape_cast %33 : vector<8x240xf32> to vector<1x8x240xf32>
    tpu.vector_store %arg9[%c0_23, %c0_24, %c0_25], %36 {strides = array<i32>} : memref<1x8x240xf32, #tpu.memory_space<vmem>>, vector<1x8x240xf32>,
    return
  }
  func.func @transform_0(%arg0: i32) -> (i32, i32, i32) {
    %c0_i32 = arith.constant 0 : i32
    %c0_i32_0 = arith.constant 0 : i32
    %c0_i32_1 = arith.constant 0 : i32
    return %arg0, %c0_i32, %c0_i32_0 : i32, i32, i32
  }
  func.func @transform_1(%arg0: i32) -> (i32, i32) {
    %c0_i32 = arith.constant 0 : i32
    %c0_i32_0 = arith.constant 0 : i32
    %c0_i32_1 = arith.constant 0 : i32
    return %c0_i32, %c0_i32_0 : i32, i32
  }
  func.func @transform_2(%arg0: i32) -> (i32, i32) {
    %c0_i32 = arith.constant 0 : i32
    %c0_i32_0 = arith.constant 0 : i32
    %c0_i32_1 = arith.constant 0 : i32
    return %c0_i32, %c0_i32_0 : i32, i32
  }
  func.func @transform_3(%arg0: i32) -> (i32, i32) {
    %c0_i32 = arith.constant 0 : i32
    %c0_i32_0 = arith.constant 0 : i32
    %c0_i32_1 = arith.constant 0 : i32
    return %c0_i32, %c0_i32_0 : i32, i32
  }
  func.func @transform_4(%arg0: i32) -> (i32, i32) {
    %c0_i32 = arith.constant 0 : i32
    %c0_i32_0 = arith.constant 0 : i32
    %c0_i32_1 = arith.constant 0 : i32
    return %c0_i32, %c0_i32_0 : i32, i32
  }
  func.func @transform_5(%arg0: i32) -> (i32, i32) {
    %c0_i32 = arith.constant 0 : i32
    %c0_i32_0 = arith.constant 0 : i32
    %c0_i32_1 = arith.constant 0 : i32
    return %c0_i32, %c0_i32_0 : i32, i32
  }
  func.func @transform_6(%arg0: i32) -> (i32, i32) {
    %c0_i32 = arith.constant 0 : i32
    %c0_i32_0 = arith.constant 0 : i32
    %c0_i32_1 = arith.constant 0 : i32
    return %c0_i32, %c0_i32_0 : i32, i32
  }
  func.func @transform_7(%arg0: i32) -> (i32, i32) {
    %c0_i32 = arith.constant 0 : i32
    %c0_i32_0 = arith.constant 0 : i32
    %c0_i32_1 = arith.constant 0 : i32
    return %c0_i32, %c0_i32_0 : i32, i32
  }
  func.func @transform_8(%arg0: i32) -> (i32, i32, i32) {
    %c0_i32 = arith.constant 0 : i32
    %c0_i32_0 = arith.constant 0 : i32
    %c0_i32_1 = arith.constant 0 : i32
    return %arg0, %c0_i32, %c0_i32_0 : i32, i32, i32
  }
}

</mosaic_0001>

<llo_original>
// kernel: tpu_custom_call.1
$region0: #{tpu_custom_call.1}
  #allocation0 [shape = 'u32[]', space=smem, size = 0x4, offset = 0x4, fixed_abs, tag = 'smem constant byte address 0x4 - core index']
  #allocation1 [shape = 'u32[144,128]{1,0:T(1,128)}', space=vmem, size = 0x12000, scoped, tag = 'internal scratch']
  %s0 = inlined_call_operand.vmem [shape: f32[2,8,50], index: 0, kind: input, shape index: {}]
  %s1 = inlined_call_operand.vmem [shape: f32[8,8], index: 1, kind: input, shape index: {}]
  %s2 = inlined_call_operand.vmem [shape: bf16[50,120], index: 2, kind: input, shape index: {}]
  %s3 = inlined_call_operand.vmem [shape: f32[1,120], index: 3, kind: input, shape index: {}]
  %s4 = inlined_call_operand.vmem [shape: f32[1,120], index: 4, kind: input, shape index: {}]
  %s5 = inlined_call_operand.vmem [shape: bf16[120,80], index: 5, kind: input, shape index: {}]
  %s6 = inlined_call_operand.vmem [shape: f32[1,80], index: 6, kind: input, shape index: {}]
  %s7 = inlined_call_operand.vmem [shape: f32[1,80], index: 7, kind: input, shape index: {}]
  %s8 = inlined_call_operand.hbm [shape: f32[2,8,240], index: 8, kind: output, shape index: {}]
  %s9 = sld [smem:[#allocation0]]
  $region65: #{tpu_custom_call.1} parent=0
    _
  %s11 = ssub.s32 1, %s9
  %s12 = scalar_select 0, %s11, %s9
  $region1: #{tpu_custom_call.1} parent=0
    #allocation2 [shape = 'u8[16384]{0}', space=vmem, size = 0x4000, scoped, tag = 'output window, operand 0']
    #allocation3 [shape = 's32[2]{0}', space=sflag, size = 0x8, scoped, tag = 'scoped memory for tpu_custom_call.1']
    %13 = vsyncpa [#allocation3], 0
    %s14 = scalar_lea.sflag [#allocation3], 1
    %15 = vsyncpa %s14, 0
    loop: start=0, step=1, limit=4
    $region2: #{tpu_custom_call.1} parent=1 // loop_pre_header
      _
    $region3: #{tpu_custom_call.1} parent=1 // loop_header
      %s17 = sphi 0, %s21
      %p18 = scmp.ge.s32.totalorder %s17, 4
      %s27 = sphi 0, %s29
      %s30 = sphi 0, %s27
      %s31 = sphi 0, %s30
      %s47 = sphi 0, %s31
      %s51 = sphi 0, %s51
      %s53 = sphi 0, %s51
      %s54 = sphi 0, %s53
      %s68 = sphi 0, %s54
      %s72 = sphi 0, %s72
      %s74 = sphi 0, %s72
      %s75 = sphi 0, %s74
      %s89 = sphi 0, %s75
      %s93 = sphi 0, %s93
      %s95 = sphi 0, %s93
      %s96 = sphi 0, %s95
      %s110 = sphi 0, %s96
      %s114 = sphi 0, %s114
      %s116 = sphi 0, %s114
      %s117 = sphi 0, %s116
      %s131 = sphi 0, %s117
      %s135 = sphi 0, %s135
      %s137 = sphi 0, %s135
      %s138 = sphi 0, %s137
      %s152 = sphi 0, %s138
      %s156 = sphi 0, %s156
      %s158 = sphi 0, %s156
      %s159 = sphi 0, %s158
      %s173 = sphi 0, %s159
      %s177 = sphi 0, %s177
      %s179 = sphi 0, %s177
      %s180 = sphi 0, %s179
      %s194 = sphi 0, %s180
      %s200 = sphi 0, %s202
      %s203 = sphi 0, %s200
      %s204 = sphi 0, %s203
      %s220 = sphi 0, %s204
    $region4: #{tpu_custom_call.1} parent=1 // loop_header_branch
      %20 = sbr.rel (%p18) target = $region8
    $region5: #{tpu_custom_call.1} parent=1 // loop_body
      %s22 = ssub.s32 %s17, 1
      %s23 = ssub.s32 %s17, 2
      %s24 = sadd.s32 %s17, 1
      %s25 = ssub.s32 %s17, %s24
      %p26 = scmp.eq.s32.totalorder %s25, 0
      %s28 = sadd.s32 %s27, 1
      %s29 = scalar_select %p26, %s27, %s28
      %p32 = pneg %p26
      %p33 = scmp.eq.s32.totalorder %s17, 1
      %p34 = por %p32, %p33
      %p35 = scmp.ne.s32.totalorder %s27, %s30
      %p36 = scmp.eq.s32.totalorder %s17, 0
      %p37 = por %p35, %p36
      %p38 = scmp.ne.s32.totalorder %s27, %s30
      %p39 = scmp.eq.s32.totalorder %s22, 1
      %p40 = por %p38, %p39
      %p41 = scmp.ne.s32.totalorder %s30, %s31
      %p42 = scmp.eq.s32.totalorder %s22, 0
      %p43 = por %p41, %p42
      %p44 = scmp.ne.s32.totalorder %s30, %s31
      %p45 = scmp.eq.s32.totalorder %s23, 1
      %p46 = por %p44, %p45
      %p48 = scmp.ne.s32.totalorder %s31, %s47
      %p49 = scmp.eq.s32.totalorder %s23, 0
      %p50 = por %p48, %p49
      %s52 = sadd.s32 %s51, 1
      %p55 = scmp.eq.s32.totalorder %s17, 1
      %p56 = scmp.ne.s32.totalorder %s51, %s53
      %p57 = scmp.eq.s32.totalorder %s17, 0
      %p58 = por %p56, %p57
      %p59 = scmp.ne.s32.totalorder %s51, %s53
      %p60 = scmp.eq.s32.totalorder %s22, 1
      %p61 = por %p59, %p60
      %p62 = scmp.ne.s32.totalorder %s53, %s54
      %p63 = scmp.eq.s32.totalorder %s22, 0
      %p64 = por %p62, %p63
      %p65 = scmp.ne.s32.totalorder %s53, %s54
      %p66 = scmp.eq.s32.totalorder %s23, 1
      %p67 = por %p65, %p66
      %p69 = scmp.ne.s32.totalorder %s54, %s68
      %p70 = scmp.eq.s32.totalorder %s23, 0
      %p71 = por %p69, %p70
      %s73 = sadd.s32 %s72, 1
      %p76 = scmp.eq.s32.totalorder %s17, 1
      %p77 = scmp.ne.s32.totalorder %s72, %s74
      %p78 = scmp.eq.s32.totalorder %s17, 0
      %p79 = por %p77, %p78
      %p80 = scmp.ne.s32.totalorder %s72, %s74
      %p81 = scmp.eq.s32.totalorder %s22, 1
      %p82 = por %p80, %p81
      %p83 = scmp.ne.s32.totalorder %s74, %s75
      %p84 = scmp.eq.s32.totalorder %s22, 0
      %p85 = por %p83, %p84
      %p86 = scmp.ne.s32.totalorder %s74, %s75
      %p87 = scmp.eq.s32.totalorder %s23, 1
      %p88 = por %p86, %p87
      %p90 = scmp.ne.s32.totalorder %s75, %s89
      %p91 = scmp.eq.s32.totalorder %s23, 0
      %p92 = por %p90, %p91
      %s94 = sadd.s32 %s93, 1
      %p97 = scmp.eq.s32.totalorder %s17, 1
      %p98 = scmp.ne.s32.totalorder %s93, %s95
      %p99 = scmp.eq.s32.totalorder %s17, 0
      %p100 = por %p98, %p99
      %p101 = scmp.ne.s32.totalorder %s93, %s95
      %p102 = scmp.eq.s32.totalorder %s22, 1
      %p103 = por %p101, %p102
      %p104 = scmp.ne.s32.totalorder %s95, %s96
      %p105 = scmp.eq.s32.totalorder %s22, 0
      %p106 = por %p104, %p105
      %p107 = scmp.ne.s32.totalorder %s95, %s96
      %p108 = scmp.eq.s32.totalorder %s23, 1
      %p109 = por %p107, %p108
      %p111 = scmp.ne.s32.totalorder %s96, %s110
      %p112 = scmp.eq.s32.totalorder %s23, 0
      %p113 = por %p111, %p112
      %s115 = sadd.s32 %s114, 1
      %p118 = scmp.eq.s32.totalorder %s17, 1
      %p119 = scmp.ne.s32.totalorder %s114, %s116
      %p120 = scmp.eq.s32.totalorder %s17, 0
      %p121 = por %p119, %p120
      %p122 = scmp.ne.s32.totalorder %s114, %s116
      %p123 = scmp.eq.s32.totalorder %s22, 1
      %p124 = por %p122, %p123
      %p125 = scmp.ne.s32.totalorder %s116, %s117
      %p126 = scmp.eq.s32.totalorder %s22, 0
      %p127 = por %p125, %p126
      %p128 = scmp.ne.s32.totalorder %s116, %s117
      %p129 = scmp.eq.s32.totalorder %s23, 1
      %p130 = por %p128, %p129
      %p132 = scmp.ne.s32.totalorder %s117, %s131
      %p133 = scmp.eq.s32.totalorder %s23, 0
      %p134 = por %p132, %p133
      %s136 = sadd.s32 %s135, 1
      %p139 = scmp.eq.s32.totalorder %s17, 1
      %p140 = scmp.ne.s32.totalorder %s135, %s137
      %p141 = scmp.eq.s32.totalorder %s17, 0
      %p142 = por %p140, %p141
      %p143 = scmp.ne.s32.totalorder %s135, %s137
      %p144 = scmp.eq.s32.totalorder %s22, 1
      %p145 = por %p143, %p144
      %p146 = scmp.ne.s32.totalorder %s137, %s138
      %p147 = scmp.eq.s32.totalorder %s22, 0
      %p148 = por %p146, %p147
      %p149 = scmp.ne.s32.totalorder %s137, %s138
      %p150 = scmp.eq.s32.totalorder %s23, 1
      %p151 = por %p149, %p150
      %p153 = scmp.ne.s32.totalorder %s138, %s152
      %p154 = scmp.eq.s32.totalorder %s23, 0
      %p155 = por %p153, %p154
      %s157 = sadd.s32 %s156, 1
      %p160 = scmp.eq.s32.totalorder %s17, 1
      %p161 = scmp.ne.s32.totalorder %s156, %s158
      %p162 = scmp.eq.s32.totalorder %s17, 0
      %p163 = por %p161, %p162
      %p164 = scmp.ne.s32.totalorder %s156, %s158
      %p165 = scmp.eq.s32.totalorder %s22, 1
      %p166 = por %p164, %p165
      %p167 = scmp.ne.s32.totalorder %s158, %s159
      %p168 = scmp.eq.s32.totalorder %s22, 0
      %p169 = por %p167, %p168
      %p170 = scmp.ne.s32.totalorder %s158, %s159
      %p171 = scmp.eq.s32.totalorder %s23, 1
      %p172 = por %p170, %p171
      %p174 = scmp.ne.s32.totalorder %s159, %s173
      %p175 = scmp.eq.s32.totalorder %s23, 0
      %p176 = por %p174, %p175
      %s178 = sadd.s32 %s177, 1
      %p181 = scmp.eq.s32.totalorder %s17, 1
      %p182 = scmp.ne.s32.totalorder %s177, %s179
      %p183 = scmp.eq.s32.totalorder %s17, 0
      %p184 = por %p182, %p183
      %p185 = scmp.ne.s32.totalorder %s177, %s179
      %p186 = scmp.eq.s32.totalorder %s22, 1
      %p187 = por %p185, %p186
      %p188 = scmp.ne.s32.totalorder %s179, %s180
      %p189 = scmp.eq.s32.totalorder %s22, 0
      %p190 = por %p188, %p189
      %p191 = scmp.ne.s32.totalorder %s179, %s180
      %p192 = scmp.eq.s32.totalorder %s23, 1
      %p193 = por %p191, %p192
      %p195 = scmp.ne.s32.totalorder %s180, %s194
      %p196 = scmp.eq.s32.totalorder %s23, 0
      %p197 = por %p195, %p196
      %s198 = ssub.s32 %s17, %s24
      %p199 = scmp.eq.s32.totalorder %s198, 0
      %s201 = sadd.s32 %s200, 1
      %s202 = scalar_select %p199, %s200, %s201
      %p205 = pneg %p199
      %p206 = scmp.eq.s32.totalorder %s17, 1
      %p207 = por %p205, %p206
      %p208 = scmp.ne.s32.totalorder %s200, %s203
      %p209 = scmp.eq.s32.totalorder %s17, 0
      %p210 = por %p208, %p209
      %p211 = scmp.ne.s32.totalorder %s200, %s203
      %p212 = scmp.eq.s32.totalorder %s22, 1
      %p213 = por %p211, %p212
      %p214 = scmp.ne.s32.totalorder %s203, %s204
      %p215 = scmp.eq.s32.totalorder %s22, 0
      %p216 = por %p214, %p215
      %p217 = scmp.ne.s32.totalorder %s203, %s204
      %p218 = scmp.eq.s32.totalorder %s23, 1
      %p219 = por %p217, %p218
      %p221 = scmp.ne.s32.totalorder %s204, %s220
      %p222 = scmp.eq.s32.totalorder %s23, 0
      %p223 = por %p221, %p222
      %p224 = scmp.le.s32.totalorder 1, %s17
      %p225 = scmp.lt.s32.totalorder %s17, 3
      %p226 = pnand %p224, %p225
      %p227 = pneg %p226
      // Predicated region
      $region9: #{tpu_custom_call.1} parent=5 // pred_check
        _
      $region10: #{tpu_custom_call.1} parent=5 // pred_check_branch
        %229 = sbr.rel (%p226) target = $region12
      $region11: #{tpu_custom_call.1} parent=5 // pred_region
        %s230 = ssub.s32 %s17, 1
        // Predicated region
        $region13: #{tpu_custom_call.1} parent=11 // pred_check
          %p231 = pneg %p64
        $region14: #{tpu_custom_call.1} parent=11 // pred_check_branch
          %233 = sbr.rel (%p231) target = $region16
        $region15: #{tpu_custom_call.1} parent=11 // pred_region
          _
        $region16: #{tpu_custom_call.1} parent=11 // pred_fallthru
          _
        // Predicated region
        $region17: #{tpu_custom_call.1} parent=11 // pred_check
          %p234 = pneg %p85
        $region18: #{tpu_custom_call.1} parent=11 // pred_check_branch
          %236 = sbr.rel (%p234) target = $region20
        $region19: #{tpu_custom_call.1} parent=11 // pred_region
          _
        $region20: #{tpu_custom_call.1} parent=11 // pred_fallthru
          _
        // Predicated region
        $region21: #{tpu_custom_call.1} parent=11 // pred_check
          %p237 = pneg %p106
        $region22: #{tpu_custom_call.1} parent=11 // pred_check_branch
          %239 = sbr.rel (%p237) target = $region24
        $region23: #{tpu_custom_call.1} parent=11 // pred_region
          _
        $region24: #{tpu_custom_call.1} parent=11 // pred_fallthru
          _
        // Predicated region
        $region25: #{tpu_custom_call.1} parent=11 // pred_check
          %p240 = pneg %p127
        $region26: #{tpu_custom_call.1} parent=11 // pred_check_branch
          %242 = sbr.rel (%p240) target = $region28
        $region27: #{tpu_custom_call.1} parent=11 // pred_region
          _
        $region28: #{tpu_custom_call.1} parent=11 // pred_fallthru
          _
        // Predicated region
        $region29: #{tpu_custom_call.1} parent=11 // pred_check
          %p243 = pneg %p148
        $region30: #{tpu_custom_call.1} parent=11 // pred_check_branch
          %245 = sbr.rel (%p243) target = $region32
        $region31: #{tpu_custom_call.1} parent=11 // pred_region
          _
        $region32: #{tpu_custom_call.1} parent=11 // pred_fallthru
          _
        // Predicated region
        $region33: #{tpu_custom_call.1} parent=11 // pred_check
          %p246 = pneg %p169
        $region34: #{tpu_custom_call.1} parent=11 // pred_check_branch
          %248 = sbr.rel (%p246) target = $region36
        $region35: #{tpu_custom_call.1} parent=11 // pred_region
          _
        $region36: #{tpu_custom_call.1} parent=11 // pred_fallthru
          _
        // Predicated region
        $region37: #{tpu_custom_call.1} parent=11 // pred_check
          %p249 = pneg %p190
        $region38: #{tpu_custom_call.1} parent=11 // pred_check_branch
          %251 = sbr.rel (%p249) target = $region40
        $region39: #{tpu_custom_call.1} parent=11 // pred_region
          _
        $region40: #{tpu_custom_call.1} parent=11 // pred_fallthru
          _
      $region12: #{tpu_custom_call.1} parent=5 // pred_fallthru
        _
      %p252 = scmp.lt.s32.totalorder %s17, 2
      // Predicated region
      $region41: #{tpu_custom_call.1} parent=5 // pred_check
        %p253 = pneg %p252
      $region42: #{tpu_custom_call.1} parent=5 // pred_check_branch
        %255 = sbr.rel (%p253) target = $region44
      $region43: #{tpu_custom_call.1} parent=5 // pred_region
        // Predicated region
        $region45: #{tpu_custom_call.1} parent=43 // pred_check
          %p256 = pneg %p37
        $region46: #{tpu_custom_call.1} parent=43 // pred_check_branch
          %258 = sbr.rel (%p256) target = $region48
        $region47: #{tpu_custom_call.1} parent=43 // pred_region
          %p259 = scmp.lt.s32.totalorder %s17, 1
          %s260 = scalar_select %p259, %s17, 1
          %s261 = smul.addr %s260, 8
          %s262 = scalar_lea.vmem %s0, %s261
        $region48: #{tpu_custom_call.1} parent=43 // pred_fallthru
          _
      $region44: #{tpu_custom_call.1} parent=5 // pred_fallthru
        _
      %p263 = scmp.le.s32.totalorder 1, %s17
      %p264 = scmp.lt.s32.totalorder %s17, 3
      %p265 = pnand %p263, %p264
      %p266 = pneg %p265
      // Predicated region
      $region49: #{tpu_custom_call.1} parent=5 // pred_check
        _
      $region50: #{tpu_custom_call.1} parent=5 // pred_check_branch
        %268 = sbr.rel (%p265) target = $region52
      $region51: #{tpu_custom_call.1} parent=5 // pred_region
        %s269 = ssub.s32 %s17, 1
        %p270 = scmp.lt.s32.totalorder %s22, 1
        %s271 = scalar_select %p270, %s22, 1
        %s272 = smul.addr %s271, 8
        %s273 = scalar_lea.vmem %s0, %s272
        %p274 = pneg %p43
        %p275 = pneg %p40
        %p276 = pneg %p64
        %p277 = pneg %p61
        %p278 = pneg %p85
        %p279 = pneg %p82
        %p280 = pneg %p106
        %p281 = pneg %p103
        %p282 = pneg %p127
        %p283 = pneg %p124
        %p284 = pneg %p148
        %p285 = pneg %p145
        %p286 = pneg %p169
        %p287 = pneg %p166
        %p288 = pneg %p190
        %p289 = pneg %p187
        %p290 = pneg %p216
        %p291 = pneg %p213
        %s292 = sand.u32 %s203, 1
        %s293 = scalar_lea.sflag [#allocation3], %s292
        %s294 = sand.u32 %s203, 1
        %s295 = smul.addr %s294, 16
        %s296 = scalar_lea.vmem [#allocation2], %s295
        %p297 = scmp.lt.s32.totalorder %s22, 1
        %s298 = scalar_select %p297, %s22, 1
        %s299 = smul.addr %s298, 8
        %s300 = scalar_lea.vmem %s0, %s299
        %v302 = vld [vmem:[%s300] sm:$0xff]
        %v303 = vpack.c.bf16 %v302, %v302
        %v304 = vld [vmem:[%s2] sm:$0xf]
        %v305 = vld [vmem:[%s2 + $0x4] sm:$0xf]
        %v306 = vld [vmem:[%s2 + $0x8] sm:$0xf]
        %v307 = vld [vmem:[%s2 + $0xc] sm:$0xf]
        %v308 = vld [vmem:[%s2 + $0x10] sm:$0xf]
        %v309 = vld [vmem:[%s2 + $0x14] sm:$0xf]
        %v310 = vld [vmem:[%s2 + $0x18] sm:$0x1]
        %v311 = vld [vmem:[%s3] sm:$0x1]
        %v313 = vlaneseq
        %v314 = vshrl.u32 %v313, 7
        %v315 = vsub.s32 0, %v314
        %v316 = vrot.slane %v311, %v315
        %v325 = vunpack.c.l.b16 %v304
        %v326 = vunpack.c.l.b16 %v305
        %v327 = vunpack.c.l.b16 %v306
        %v328 = vunpack.c.l.b16 %v307
        %v329 = vunpack.c.l.b16 %v308
        %v330 = vunpack.c.l.b16 %v309
        %v331 = vunpack.c.l.b16 %v310
        %v332 = vpack.c.b16 %v326, %v325
        %v333 = vpack.c.b16 %v328, %v327
        %v334 = vpack.c.b16 %v330, %v329
        %v335 = vpack.c.b16 %v331, %v331
        %vm339 = vcmask 408576
        %v341 = vsel %vm339, %v303, 0
        %vm343 = vcmask 1040384
        %v345 = vsel %vm343, %v335, 0
        %347 = vmatprep.subr.bf16.mxu0 0
        %348 = vmatpush1.bf16.msra.mxu0 0
        %349 = vmatprep.subr.bf16.mxu0 0
        %350 = vmatpush1.bf16.msra.mxu0 0
        %351 = vmatprep.subr.bf16.mxu0 0
        %352 = vmatpush1.bf16.msra.mxu0 0
        %353 = vmatprep.subr.bf16.mxu0 0
        %354 = vmatpush1.bf16.msra.mxu0 0
        %355 = vmatprep.subr.bf16.mxu0 0
        %356 = vmatpush1.bf16.msra.mxu0 %v345
        %357 = vmatprep.subr.bf16.mxu0 0
        %358 = vmatpush1.bf16.msra.mxu0 %v334
        %359 = vmatprep.subr.bf16.mxu0 0
        %360 = vmatpush1.bf16.msra.mxu0 %v333
        %361 = vmatprep.subr.bf16.mxu0 0
        %362 = vmatpush1.bf16.msra.mxu0 %v332
        %363 = vmatprep.subr.bf16.mxu0 0
        %364 = vmatpush2.bf16.msra.mxu0 0
        %365 = vmatprep.subr.bf16.mxu0 0
        %366 = vmatpush2.bf16.msra.mxu0 0
        %367 = vmatprep.subr.bf16.mxu0 0
        %368 = vmatpush2.bf16.msra.mxu0 0
        %369 = vmatprep.subr.bf16.mxu0 0
        %370 = vmatpush2.bf16.msra.mxu0 0
        %371 = vmatprep.subr.bf16.mxu0 0
        %372 = vmatpush2.bf16.msra.mxu0 0
        %373 = vmatprep.subr.bf16.mxu0 0
        %374 = vmatpush2.bf16.msra.mxu0 0
        %375 = vmatprep.subr.bf16.mxu0 0
        %376 = vmatpush2.bf16.msra.mxu0 0
        %377 = vmatprep.subr.bf16.mxu0 0
        %378 = vmatpush2.bf16.msra.mxu0 0
        %379 = vmatprep.mubr.bf16.mxu0 0
        %380 = vmatmul.mubr.bf16.gmra.mxu0 %v341
        %v381 = vpop.f32.mrf.mxu0
        %v382 = vadd.f32 %v316, %v381
        %v383 = vpop.f32.mrf.mxu0
        %v384 = vpop.f32.mrf.mxu0
        %v385 = vpop.f32.mrf.mxu0
        %386 = vdwg.mxu0
        %v387 = vld [vmem:[%s4] sm:$0x1]
        %vm388 = vcmp.gt.f32.partialorder %v387, 0.0
        %v389 = vmax.f32 %v382, 0.0
        %v390 = vsel %vm388, 1, 0
        %v391 = vlaneseq
        %v392 = vshrl.u32 %v391, 7
        %v393 = vsub.s32 0, %v392
        %v394 = vrot.slane %v390, %v393
        %vm395 = vcmp.eq.s32.totalorder %v394, 1
        %v396 = vsel %vm395, %v389, %v382
        %v397 = vpack.c.bf16 %v396, %v396
        %v398 = vld [vmem:[%s5] sm:$0xf]
        %v399 = vld [vmem:[%s5 + $0x4] sm:$0xf]
        %v400 = vld [vmem:[%s5 + $0x8] sm:$0xf]
        %v401 = vld [vmem:[%s5 + $0xc] sm:$0xf]
        %v402 = vld [vmem:[%s5 + $0x10] sm:$0xf]
        %v403 = vld [vmem:[%s5 + $0x14] sm:$0xf]
        %v404 = vld [vmem:[%s5 + $0x18] sm:$0xf]
        %v405 = vld [vmem:[%s5 + $0x1c] sm:$0xf]
        %v406 = vld [vmem:[%s5 + $0x20] sm:$0xf]
        %v407 = vld [vmem:[%s5 + $0x24] sm:$0xf]
        %v408 = vld [vmem:[%s5 + $0x28] sm:$0xf]
        %v409 = vld [vmem:[%s5 + $0x2c] sm:$0xf]
        %v410 = vld [vmem:[%s5 + $0x30] sm:$0xf]
        %v411 = vld [vmem:[%s5 + $0x34] sm:$0xf]
        %v412 = vld [vmem:[%s5 + $0x38] sm:$0xf]
        %v413 = vld [vmem:[%s6] sm:$0x1]
        %v415 = vlaneseq
        %v416 = vshrl.u32 %v415, 7
        %v417 = vsub.s32 0, %v416
        %v418 = vrot.slane %v413, %v417
        %v435 = vunpack.c.l.b16 %v398
        %v436 = vunpack.c.l.b16 %v399
        %v437 = vunpack.c.l.b16 %v400
        %v438 = vunpack.c.l.b16 %v401
        %v439 = vunpack.c.l.b16 %v402
        %v440 = vunpack.c.l.b16 %v403
        %v441 = vunpack.c.l.b16 %v404
        %v442 = vunpack.c.l.b16 %v405
        %v443 = vunpack.c.l.b16 %v406
        %v444 = vunpack.c.l.b16 %v407
        %v445 = vunpack.c.l.b16 %v408
        %v446 = vunpack.c.l.b16 %v409
        %v447 = vunpack.c.l.b16 %v410
        %v448 = vunpack.c.l.b16 %v411
        %v449 = vunpack.c.l.b16 %v412
        %v450 = vpack.c.b16 %v436, %v435
        %v451 = vpack.c.b16 %v438, %v437
        %v452 = vpack.c.b16 %v440, %v439
        %v453 = vpack.c.b16 %v442, %v441
        %v454 = vpack.c.b16 %v444, %v443
        %v455 = vpack.c.b16 %v446, %v445
        %v456 = vpack.c.b16 %v448, %v447
        %v457 = vpack.c.b16 %v449, %v449
        %vm465 = vcmask 982016
        %v467 = vsel %vm465, %v397, 0
        %vm469 = vcmask 1043456
        %v471 = vsel %vm469, %v457, 0
        %473 = vmatprep.subr.bf16.mxu0 0
        %474 = vmatpush1.bf16.msra.mxu0 %v471
        %475 = vmatprep.subr.bf16.mxu0 0
        %476 = vmatpush1.bf16.msra.mxu0 %v456
        %477 = vmatprep.subr.bf16.mxu0 0
        %478 = vmatpush1.bf16.msra.mxu0 %v455
        %479 = vmatprep.subr.bf16.mxu0 0
        %480 = vmatpush1.bf16.msra.mxu0 %v454
        %481 = vmatprep.subr.bf16.mxu0 0
        %482 = vmatpush1.bf16.msra.mxu0 %v453
        %483 = vmatprep.subr.bf16.mxu0 0
        %484 = vmatpush1.bf16.msra.mxu0 %v452
        %485 = vmatprep.subr.bf16.mxu0 0
        %486 = vmatpush1.bf16.msra.mxu0 %v451
        %487 = vmatprep.subr.bf16.mxu0 0
        %488 = vmatpush1.bf16.msra.mxu0 %v450
        %489 = vmatprep.subr.bf16.mxu0 0
        %490 = vmatpush2.bf16.msra.mxu0 0
        %491 = vmatprep.subr.bf16.mxu0 0
        %492 = vmatpush2.bf16.msra.mxu0 0
        %493 = vmatprep.subr.bf16.mxu0 0
        %494 = vmatpush2.bf16.msra.mxu0 0
        %495 = vmatprep.subr.bf16.mxu0 0
        %496 = vmatpush2.bf16.msra.mxu0 0
        %497 = vmatprep.subr.bf16.mxu0 0
        %498 = vmatpush2.bf16.msra.mxu0 0
        %499 = vmatprep.subr.bf16.mxu0 0
        %500 = vmatpush2.bf16.msra.mxu0 0
        %501 = vmatprep.subr.bf16.mxu0 0
        %502 = vmatpush2.bf16.msra.mxu0 0
        %503 = vmatprep.subr.bf16.mxu0 0
        %504 = vmatpush2.bf16.msra.mxu0 0
        %505 = vmatprep.mubr.bf16.mxu0 0
        %506 = vmatmul.mubr.bf16.gmra.mxu0 %v467
        %v507 = vpop.f32.mrf.mxu0
        %v508 = vadd.f32 %v418, %v507
        %v509 = vpop.f32.mrf.mxu0
        %v510 = vpop.f32.mrf.mxu0
        %v511 = vpop.f32.mrf.mxu0
        %512 = vdwg.mxu0
        %v513 = vld [vmem:[%s7] sm:$0x1]
        %vm514 = vcmp.gt.f32.partialorder %v513, 0.0
        %v515 = vmax.f32 %v508, 0.0
        %v516 = vsel %vm514, 1, 0
        %v517 = vlaneseq
        %v518 = vshrl.u32 %v517, 7
        %v519 = vsub.s32 0, %v518
        %v520 = vrot.slane %v516, %v519
        %vm521 = vcmp.eq.s32.totalorder %v520, 1
        %v522 = vsel %vm521, %v515, %v508
        %v523 = vld [vmem:[%s1] sm:$0xff]
        %vm524 = vcmask 64512
        %v526 = vsel %vm524, %v523, 0
        %528 = vmatprep.subr.mxu0 0.0
        %529 = vmatpush1.msra.mxu0 0.0
        %530 = vmatprep.subr.mxu0 0.0
        %531 = vmatpush1.msra.mxu0 0.0
        %532 = vmatprep.subr.mxu0 0.0
        %533 = vmatpush1.msra.mxu0 0.0
        %534 = vmatprep.subr.mxu0 0.0
        %535 = vmatpush1.msra.mxu0 0.0
        %536 = vmatprep.subr.mxu0 0.0
        %537 = vmatpush1.msra.mxu0 0.0
        %538 = vmatprep.subr.mxu0 0.0
        %539 = vmatpush1.msra.mxu0 0.0
        %540 = vmatprep.subr.mxu0 0.0
        %541 = vmatpush1.msra.mxu0 0.0
        %542 = vmatprep.subr.mxu0 0.0
        %543 = vmatpush1.msra.mxu0 0.0
        %544 = vmatprep.subr.mxu0 0.0
        %545 = vmatpush1.msra.mxu0 0.0
        %546 = vmatprep.subr.mxu0 0.0
        %547 = vmatpush1.msra.mxu0 0.0
        %548 = vmatprep.subr.mxu0 0.0
        %549 = vmatpush1.msra.mxu0 0.0
        %550 = vmatprep.subr.mxu0 0.0
        %551 = vmatpush1.msra.mxu0 0.0
        %552 = vmatprep.subr.mxu0 0.0
        %553 = vmatpush1.msra.mxu0 0.0
        %554 = vmatprep.subr.mxu0 0.0
        %555 = vmatpush1.msra.mxu0 0.0
        %556 = vmatprep.subr.mxu0 0.0
        %557 = vmatpush1.msra.mxu0 0.0
        %558 = vmatprep.subr.mxu0 0.0
        %559 = vmatpush1.msra.mxu0 %v522
        %560 = vmatprep.subr.mxu0 0.0
        %561 = vmatpush2.msra.mxu0 0.0
        %562 = vmatprep.subr.mxu0 0.0
        %563 = vmatpush2.msra.mxu0 0.0
        %564 = vmatprep.subr.mxu0 0.0
        %565 = vmatpush2.msra.mxu0 0.0
        %566 = vmatprep.subr.mxu0 0.0
        %567 = vmatpush2.msra.mxu0 0.0
        %568 = vmatprep.subr.mxu0 0.0
        %569 = vmatpush2.msra.mxu0 0.0
        %570 = vmatprep.subr.mxu0 0.0
        %571 = vmatpush2.msra.mxu0 0.0
        %572 = vmatprep.subr.mxu0 0.0
        %573 = vmatpush2.msra.mxu0 0.0
        %574 = vmatprep.subr.mxu0 0.0
        %575 = vmatpush2.msra.mxu0 0.0
        %576 = vmatprep.subr.mxu0 0.0
        %577 = vmatpush2.msra.mxu0 0.0
        %578 = vmatprep.subr.mxu0 0.0
        %579 = vmatpush2.msra.mxu0 0.0
        %580 = vmatprep.subr.mxu0 0.0
        %581 = vmatpush2.msra.mxu0 0.0
        %582 = vmatprep.subr.mxu0 0.0
        %583 = vmatpush2.msra.mxu0 0.0
        %584 = vmatprep.subr.mxu0 0.0
        %585 = vmatpush2.msra.mxu0 0.0
        %586 = vmatprep.subr.mxu0 0.0
        %587 = vmatpush2.msra.mxu0 0.0
        %588 = vmatprep.subr.mxu0 0.0
        %589 = vmatpush2.msra.mxu0 0.0
        %590 = vmatprep.subr.mxu0 0.0
        %591 = vmatpush2.msra.mxu0 0.0
        %592 = vmatprep.mubr.f32.mxu0 0.0
        %593 = vmatmul.mubr.f32.gmra.mxu0 %v526
        %v594 = vpop.f32.mrf.mxu0
        %v595 = vadd.f32 0.0, %v594
        %v596 = vpop.f32.mrf.mxu0
        %597 = vdwg.mxu0
        %598 = vmatprep.subr.mxu0 0.0
        %599 = vmatpush1.msra.mxu0 0.0
        %600 = vmatprep.subr.mxu0 0.0
        %601 = vmatpush1.msra.mxu0 0.0
        %602 = vmatprep.subr.mxu0 0.0
        %603 = vmatpush1.msra.mxu0 0.0
        %604 = vmatprep.subr.mxu0 0.0
        %605 = vmatpush1.msra.mxu0 0.0
        %606 = vmatprep.subr.mxu0 0.0
        %607 = vmatpush1.msra.mxu0 0.0
        %608 = vmatprep.subr.mxu0 0.0
        %609 = vmatpush1.msra.mxu0 0.0
        %610 = vmatprep.subr.mxu0 0.0
        %611 = vmatpush1.msra.mxu0 0.0
        %612 = vmatprep.subr.mxu0 0.0
        %613 = vmatpush1.msra.mxu0 0.0
        %614 = vmatprep.subr.mxu0 0.0
        %615 = vmatpush1.msra.mxu0 0.0
        %616 = vmatprep.subr.mxu0 0.0
        %617 = vmatpush1.msra.mxu0 0.0
        %618 = vmatprep.subr.mxu0 0.0
        %619 = vmatpush1.msra.mxu0 0.0
        %620 = vmatprep.subr.mxu0 0.0
        %621 = vmatpush1.msra.mxu0 0.0
        %622 = vmatprep.subr.mxu0 0.0
        %623 = vmatpush1.msra.mxu0 0.0
        %624 = vmatprep.subr.mxu0 0.0
        %625 = vmatpush1.msra.mxu0 0.0
        %626 = vmatprep.subr.mxu0 0.0
        %627 = vmatpush1.msra.mxu0 0.0
        %628 = vmatprep.subr.mxu0 0.0
        %629 = vmatpush1.msra.mxu0 %v595
        %630 = vmatprep.subr.mxu0 0.0
        %631 = vmatpush2.msra.mxu0 0.0
        %632 = vmatprep.subr.mxu0 0.0
        %633 = vmatpush2.msra.mxu0 0.0
        %634 = vmatprep.subr.mxu0 0.0
        %635 = vmatpush2.msra.mxu0 0.0
        %636 = vmatprep.subr.mxu0 0.0
        %637 = vmatpush2.msra.mxu0 0.0
        %638 = vmatprep.subr.mxu0 0.0
        %639 = vmatpush2.msra.mxu0 0.0
        %640 = vmatprep.subr.mxu0 0.0
        %641 = vmatpush2.msra.mxu0 0.0
        %642 = vmatprep.subr.mxu0 0.0
        %643 = vmatpush2.msra.mxu0 0.0
        %644 = vmatprep.subr.mxu0 0.0
        %645 = vmatpush2.msra.mxu0 0.0
        %646 = vmatprep.subr.mxu0 0.0
        %647 = vmatpush2.msra.mxu0 0.0
        %648 = vmatprep.subr.mxu0 0.0
        %649 = vmatpush2.msra.mxu0 0.0
        %650 = vmatprep.subr.mxu0 0.0
        %651 = vmatpush2.msra.mxu0 0.0
        %652 = vmatprep.subr.mxu0 0.0
        %653 = vmatpush2.msra.mxu0 0.0
        %654 = vmatprep.subr.mxu0 0.0
        %655 = vmatpush2.msra.mxu0 0.0
        %656 = vmatprep.subr.mxu0 0.0
        %657 = vmatpush2.msra.mxu0 0.0
        %658 = vmatprep.subr.mxu0 0.0
        %659 = vmatpush2.msra.mxu0 0.0
        %660 = vmatprep.subr.mxu0 0.0
        %661 = vmatpush2.msra.mxu0 0.0
        %662 = vmatprep.mubr.f32.mxu0 0.0
        %663 = vmatmul.mubr.f32.gmra.mxu0 %v526
        %v664 = vpop.f32.mrf.mxu0
        %v665 = vadd.f32 0.0, %v664
        %v666 = vpop.f32.mrf.mxu0
        %667 = vdwg.mxu0
        %669 = vrot.lane.b32.xlu0 %v595, 80
        %v670 = vpop.permute.xlu0 %669
        %673 = vrot.lane.b32.xlu0 %v665, 32
        %v674 = vpop.permute.xlu0 %673
        %vm676 = vcmask 654336
        %v677 = vsel %vm676, %v522, %v670
        %vm678 = vcmask 261120
        %v679 = vsel %vm678, %v670, %v674
        %680 = vst [vmem:[%s296] sm:$0xff] %v677
        %vm681 = vcmask 916480
        %682 = vst.msk [vmem:[%s296 + $0x8] sm:$0xff] %vm681, %v679
        %s683 = sand.u32 %s203, 1
        %s684 = scalar_lea.sflag [#allocation3], %s683
        %s685 = sand.u32 %s203, 1
        %s686 = smul.addr %s685, 16
        %s687 = scalar_lea.vmem [#allocation2], %s686
        // Predicated region
        $region53: #{tpu_custom_call.1} parent=51 // pred_check
          %p688 = pneg %p213
        $region54: #{tpu_custom_call.1} parent=51 // pred_check_branch
          %690 = sbr.rel (%p688) target = $region56
        $region55: #{tpu_custom_call.1} parent=51 // pred_region
          %s692 = ssub.s32 256, 256
          %693 = vsyncadd %s684, %s692
          %s694 = smul.addr %s22, 2
          %s695 = smul.addr %s694, 128
          %s696 = scalar_lea.hbm %s8, %s695
          %s698 = sshll.u32 %s687, 4
          %s699 = int_to_ptr.vmem [resolvable:$true] %s698
          %701 = dma.vmem_to_hbm [thread:$0]  %s699, 256, %s696, %s684
        $region56: #{tpu_custom_call.1} parent=51 // pred_fallthru
          _
      $region52: #{tpu_custom_call.1} parent=5 // pred_fallthru
        _
      %p702 = scmp.le.s32.totalorder 2, %s17
      // Predicated region
      $region57: #{tpu_custom_call.1} parent=5 // pred_check
        %p703 = pneg %p702
      $region58: #{tpu_custom_call.1} parent=5 // pred_check_branch
        %705 = sbr.rel (%p703) target = $region60
      $region59: #{tpu_custom_call.1} parent=5 // pred_region
        %s706 = ssub.s32 %s17, 2
        // Predicated region
        $region61: #{tpu_custom_call.1} parent=59 // pred_check
          %p707 = pneg %p219
        $region62: #{tpu_custom_call.1} parent=59 // pred_check_branch
          %709 = sbr.rel (%p707) target = $region64
        $region63: #{tpu_custom_call.1} parent=59 // pred_region
          %s710 = sand.u32 %s204, 1
          %s711 = scalar_lea.sflag [#allocation3], %s710
          %s712 = sand.u32 %s204, 1
          %s713 = smul.addr %s712, 16
          %s714 = scalar_lea.vmem [#allocation2], %s713
          %715 = dma.done %s711, 256
        $region64: #{tpu_custom_call.1} parent=59 // pred_fallthru
          _
      $region60: #{tpu_custom_call.1} parent=5 // pred_fallthru
        _
    $region6: #{tpu_custom_call.1} parent=1 // loop_footer
      %s21 = sadd.s32 1, %s17
    $region7: #{tpu_custom_call.1} parent=1 // loop_footer_branch
      %16 = sbr.rel target = $region3
    $region8: #{tpu_custom_call.1} parent=1 // loop_exit
      _
    %716 = vsyncpa [#allocation3], 1
    %s717 = scalar_lea.sflag [#allocation3], 1
    %718 = vsyncpa %s717, 1

</llo_original>
